<compile_context>
chip_gen: v6e
topology: v6e:2x2x1
jax: 0.10.0
libtpu: 0.0.40
codegen_flags: <defaults>
</compile_context>

<pallas_src>
import functools

import jax
import jax.numpy as jnp
from jax.experimental import pallas as pl
from jax.experimental.pallas import tpu as pltpu


def _gru_seq_kernel(x_ref, h0_ref, wcat_ref, whh_h_ref, hseq_ref, h_scr, *, n, d_in):
    t = pl.program_id(0)

    @pl.when(t == 0)
    def _():
        h_scr[...] = h0_ref[...].astype(jnp.float32)

    x = x_ref[...]          # [B, D_in]   (leading T dim squeezed away)
    h_tm1 = h_scr[...]      # [B, N]      f32 carry, VMEM-resident

    # Fused [r|z|h] pre-activations: two independent MXU pushes (x part and
    # h part of the packed slab) accumulated in f32.  The recurrent slab's
    # candidate columns are exact zeros, so pre[:, 2n:] == x @ W_ih_h exactly.
    pre = (
        jnp.dot(x, wcat_ref[:d_in, :], preferred_element_type=jnp.float32)
        + jnp.dot(h_tm1, wcat_ref[d_in:, :], preferred_element_type=jnp.float32)
    )                                                   # [B, 3N]

    # r is a lane-prefix slice (no relayout); it gates the only dependent MXU
    # push, so compute it and issue that matmul immediately.
    r = jax.nn.sigmoid(pre[:, :n])                      # [B, N]
    rec_h = jnp.dot(r * h_tm1, whh_h_ref[...], preferred_element_type=jnp.float32)

    # z's sigmoid and the gating (EUP/VPU) overlap the MXU drain.
    z = jax.nn.sigmoid(pre[:, n:2 * n])                 # [B, N]
    hh = jnp.tanh(pre[:, 2 * n:] + rec_h)               # [B, N]
    h_new = z * h_tm1 + (1.0 - z) * hh

    h_scr[...] = h_new                                  # carry to next step
    hseq_ref[...] = h_new.astype(hseq_ref.dtype)        # emit h_t


def _pack_weights(weight_ih_t, weight_hh_t, n):
    """Reorder gates torch-style [z|r|h] -> [r|z|h] and pack into two slabs.

    NOTE: if this wrapper is called repeatedly (e.g. inside a training loop),
    hoist this packing out of the loop so it is materialized once.
    """
    d_in = weight_ih_t.shape[0]
    w_ih_rzh = jnp.concatenate(
        [weight_ih_t[:, n:2 * n], weight_ih_t[:, :n], weight_ih_t[:, 2 * n:]],
        axis=1,
    )                                                    # [D_in, 3N]
    w_hh_rz0 = jnp.concatenate(
        [weight_hh_t[:, n:2 * n], weight_hh_t[:, :n],
         jnp.zeros((n, n), weight_hh_t.dtype)],          # exact zeros (correctness!)
        axis=1,
    )                                                    # [N, 3N]
    w_cat = jnp.concatenate([w_ih_rzh, w_hh_rz0], axis=0)  # [D_in + N, 3N]
    w_hh_h = weight_hh_t[:, 2 * n:]                         # [N, N]
    del d_in
    return w_cat, w_hh_h


def gru_tensorflow_like_sequence(x_seq, h0, weight_ih_t, weight_hh_t):
    """Drive the GRU cell over a sequence inside one pallas_call.

    x_seq       : [T, B, D_in] float32
    h0          : [B, N]       float32
    weight_ih_t : [D_in, 3N]   float32 (== torch weight_ih.T, gate order z|r|h)
    weight_hh_t : [N, 3N]      float32 (== torch weight_hh.T, gate order z|r|h)
    returns     : [T, B, N]    float32 (h_t for every step)
    """
    T, B, d_in = x_seq.shape
    n = h0.shape[-1]
    assert weight_ih_t.shape == (d_in, 3 * n)
    assert weight_hh_t.shape == (n, 3 * n)

    w_cat, w_hh_h = _pack_weights(weight_ih_t, weight_hh_t, n)

    kernel = functools.partial(_gru_seq_kernel, n=n, d_in=d_in)

    flops = 2 * T * B * ((d_in + n) * 3 * n + n * n)
    transcendentals = T * B * 3 * n          # 2N sigmoids + N tanh per row/step
    bytes_accessed = 4 * (
        T * B * d_in + B * n + (d_in + n) * 3 * n + n * n + T * B * n
    )

    return pl.pallas_call(
        kernel,
        out_shape=jax.ShapeDtypeStruct((T, B, n), x_seq.dtype),
        grid_spec=pltpu.PrefetchScalarGridSpec(
            num_scalar_prefetch=0,
            grid=(T,),
            in_specs=[
                # Per-step x tile; leading T dim squeezed out of the kernel view.
                pl.BlockSpec((None, B, d_in), lambda t: (t, 0, 0)),
                # Constant block index => DMA'd once, VMEM-resident for all T.
                pl.BlockSpec((B, n), lambda t: (0, 0)),
                pl.BlockSpec(w_cat.shape, lambda t: (0, 0)),
                pl.BlockSpec(w_hh_h.shape, lambda t: (0, 0)),
            ],
            out_specs=pl.BlockSpec((None, B, n), lambda t: (t, 0, 0)),
            scratch_shapes=[pltpu.VMEM((B, n), jnp.float32)],   # carried hidden state
        ),
        compiler_params=pltpu.CompilerParams(dimension_semantics=("arbitrary",)),
        cost_estimate=pl.CostEstimate(
            flops=flops,
            transcendentals=transcendentals,
            bytes_accessed=bytes_accessed,
        ),
    )(x_seq, h0, w_cat, w_hh_h)


def gru_tensorflow_like(inputs, states, weight_ih_t, weight_hh_t):
    """Single-step forward matching the torch module exactly (T=1 case).

    inputs      : [B, D_in] float32
    states      : [B, N]    float32
    returns     : [B, N]    float32
    """
    h_seq = gru_tensorflow_like_sequence(inputs[None], states, weight_ih_t, weight_hh_t)
    return h_seq[0]


# ----------------------------- pure-JAX references -----------------------------
def _reference_step(inputs, states, wih_t, whh_t, n):
    h_tm1 = states
    x_z = inputs @ wih_t[:, :n]
    x_r = inputs @ wih_t[:, n:2 * n]
    x_h = inputs @ wih_t[:, 2 * n:]
    rec_z = h_tm1 @ whh_t[:, :n]
    rec_r = h_tm1 @ whh_t[:, n:2 * n]
    z = jax.nn.sigmoid(x_z + rec_z)
    r = jax.nn.sigmoid(x_r + rec_r)
    rec_h = (r * h_tm1) @ whh_t[:, 2 * n:]
    hh = jnp.tanh(x_h + rec_h)
    return z * h_tm1 + (1.0 - z) * hh


def _reference_seq(x_seq, h0, wih_t, whh_t, n):
    def step(h, x):
        h_new = _reference_step(x, h, wih_t, whh_t, n)
        return h_new, h_new

    _, hs = jax.lax.scan(step, h0, x_seq)
    return hs


if __name__ == "__main__":
    T = 6        # sequence length
    B = 8        # batch
    D_IN = 48    # input feature size
    N = 32       # hidden size (the module's `input_size`)

    key = jax.random.PRNGKey(0)
    k_x, k_h, k_wih, k_whh = jax.random.split(key, 4)

    x_seq = jax.random.normal(k_x, (T, B, D_IN), dtype=jnp.float32)
    h0 = jax.random.normal(k_h, (B, N), dtype=jnp.float32)
    # Stored already-transposed (== weight.T inside the torch module), gate order z|r|h.
    weight_ih_t = 0.1 * jax.random.normal(k_wih, (D_IN, 3 * N), dtype=jnp.float32)
    weight_hh_t = 0.1 * jax.random.normal(k_whh, (N, 3 * N), dtype=jnp.float32)

    # Sequence variant (the performance path): T steps in one pallas_call.
    h_seq = gru_tensorflow_like_sequence(x_seq, h0, weight_ih_t, weight_hh_t)
    h_seq = jax.block_until_ready(h_seq)
    ref_seq = _reference_seq(x_seq, h0, weight_ih_t, weight_hh_t, N)
    assert h_seq.shape == (T, B, N)
    assert jnp.allclose(h_seq, ref_seq, atol=1e-5, rtol=1e-5), "sequence mismatch vs reference"

    # Single-step variant (exact semantics of GRUTensorflowLike.forward).
    out1 = gru_tensorflow_like(x_seq[0], h0, weight_ih_t, weight_hh_t)
    out1 = jax.block_until_ready(out1)
    ref1 = _reference_step(x_seq[0], h0, weight_ih_t, weight_hh_t, N)
    assert out1.shape == (B, N)
    assert jnp.allclose(out1, ref1, atol=1e-5, rtol=1e-5), "single-step mismatch vs reference"

    print("KERNEL_OK")
</pallas_src>

<mosaic_0001>
module attributes {stable_mosaic.version = 11 : i64} {
  func.func @_gru_seq_kernel(%arg0: i32, %arg1: memref<1x8x48xf32, #tpu.memory_space<vmem>>, %arg2: memref<8x32xf32, #tpu.memory_space<vmem>>, %arg3: memref<80x96xf32, #tpu.memory_space<vmem>>, %arg4: memref<32x32xf32, #tpu.memory_space<vmem>>, %arg5: memref<1x8x32xf32, #tpu.memory_space<vmem>>, %arg6: memref<8x32xf32, #tpu.memory_space<vmem>>) attributes {dimension_semantics = [#tpu.dimension_semantics<arbitrary>], iteration_bounds = array<i64: 6>, scalar_prefetch = 0 : i64, scratch_operands = 1 : i64, tpu.core_type = #tpu.core_type<tc>, window_params = [{transform_indices = @transform_0, window_bounds = array<i64: 1, 8, 48>}, {pipeline_mode = #tpu.pipeline_mode<synchronous>, transform_indices = @transform_1, window_bounds = array<i64: 8, 32>}, {pipeline_mode = #tpu.pipeline_mode<synchronous>, transform_indices = @transform_2, window_bounds = array<i64: 80, 96>}, {pipeline_mode = #tpu.pipeline_mode<synchronous>, transform_indices = @transform_3, window_bounds = array<i64: 32, 32>}, {transform_indices = @transform_4, window_bounds = array<i64: 1, 8, 32>}]} {
    %c0_i32 = arith.constant 0 : i32
    %0 = arith.cmpi eq, %arg0, %c0_i32 : i32
    %1 = arith.extui %0 : i1 to i32
    %c0_i32_0 = arith.constant 0 : i32
    %2 = arith.cmpi ne, %1, %c0_i32_0 : i32
    scf.if %2 {
      %c0_20 = arith.constant 0 : index
      %c0_21 = arith.constant 0 : index
      %38 = vector.load %arg2[%c0_20, %c0_21] : memref<8x32xf32, #tpu.memory_space<vmem>>, vector<8x32xf32>
      %c0_22 = arith.constant 0 : index
      %c0_23 = arith.constant 0 : index
      %39 = vector.load %arg6[%c0_22, %c0_23] : memref<8x32xf32, #tpu.memory_space<vmem>>, vector<8x32xf32>
      tpu.vector_store %arg6[%c0_22, %c0_23], %38 {strides = array<i32>} : memref<8x32xf32, #tpu.memory_space<vmem>>, vector<8x32xf32>,
    } else {
    }
    %c0 = arith.constant 0 : index
    %c0_1 = arith.constant 0 : index
    %c0_2 = arith.constant 0 : index
    %3 = vector.load %arg1[%c0, %c0_1, %c0_2] : memref<1x8x48xf32, #tpu.memory_space<vmem>>, vector<1x8x48xf32>
    %4 = vector.shape_cast %3 : vector<1x8x48xf32> to vector<8x48xf32>
    %c0_3 = arith.constant 0 : index
    %c0_4 = arith.constant 0 : index
    %5 = vector.load %arg6[%c0_3, %c0_4] : memref<8x32xf32, #tpu.memory_space<vmem>>, vector<8x32xf32>
    %c0_5 = arith.constant 0 : index
    %c0_6 = arith.constant 0 : index
    %6 = vector.load %arg3[%c0_5, %c0_6] : memref<80x96xf32, #tpu.memory_space<vmem>>, vector<48x96xf32>
    %cst = arith.constant dense<0.000000e+00> : vector<8x96xf32>
    %7 = tpu.matmul %4, %6, %cst {dimension_numbers = #tpu.dot_dimension_numbers<[1], [0], [0], [1], [0, 0, 1, 1], [], []>} : vector<8x48xf32>, vector<48x96xf32>, vector<8x96xf32> -> vector<8x96xf32>
    %c48 = arith.constant 48 : index
    %c0_7 = arith.constant 0 : index
    %8 = vector.load %arg3[%c48, %c0_7] : memref<80x96xf32, #tpu.memory_space<vmem>>, vector<32x96xf32>
    %cst_8 = arith.constant dense<0.000000e+00> : vector<8x96xf32>
    %9 = tpu.matmul %5, %8, %cst_8 {dimension_numbers = #tpu.dot_dimension_numbers<[1], [0], [0], [1], [0, 0, 1, 1], [], []>} : vector<8x32xf32>, vector<32x96xf32>, vector<8x96xf32> -> vector<8x96xf32>
    %10 = arith.addf %7, %9 : vector<8x96xf32>
    %11 = vector.extract_strided_slice %10 {offsets = [0, 0], sizes = [8, 32], strides = [1, 1]} : vector<8x96xf32> to vector<8x32xf32>
    %12 = arith.negf %11 : vector<8x32xf32>
    %13 = math.exp %12 : vector<8x32xf32>
    %cst_9 = arith.constant 1.000000e+00 : f32
    %14 = vector.broadcast %cst_9 : f32 to vector<8x32xf32>
    %15 = arith.addf %14, %13 : vector<8x32xf32>
    %16 = arith.divf %14, %15 : vector<8x32xf32>
    %17 = arith.mulf %16, %5 : vector<8x32xf32>
    %c0_10 = arith.constant 0 : index
    %c0_11 = arith.constant 0 : index
    %18 = vector.load %arg4[%c0_10, %c0_11] : memref<32x32xf32, #tpu.memory_space<vmem>>, vector<32x32xf32>
    %cst_12 = arith.constant dense<0.000000e+00> : vector<8x32xf32>
    %19 = tpu.matmul %17, %18, %cst_12 {dimension_numbers = #tpu.dot_dimension_numbers<[1], [0], [0], [1], [0, 0, 1, 1], [], []>} : vector<8x32xf32>, vector<32x32xf32>, vector<8x32xf32> -> vector<8x32xf32>
    %20 = vector.extract_strided_slice %10 {offsets = [0, 32], sizes = [8, 32], strides = [1, 1]} : vector<8x96xf32> to vector<8x32xf32>
    %21 = arith.negf %20 : vector<8x32xf32>
    %22 = math.exp %21 : vector<8x32xf32>
    %cst_13 = arith.constant 1.000000e+00 : f32
    %23 = vector.broadcast %cst_13 : f32 to vector<8x32xf32>
    %24 = arith.addf %23, %22 : vector<8x32xf32>
    %25 = arith.divf %23, %24 : vector<8x32xf32>
    %26 = vector.extract_strided_slice %10 {offsets = [0, 64], sizes = [8, 32], strides = [1, 1]} : vector<8x96xf32> to vector<8x32xf32>
    %27 = arith.addf %26, %19 : vector<8x32xf32>
    %28 = math.tanh %27 : vector<8x32xf32>
    %29 = arith.mulf %25, %5 : vector<8x32xf32>
    %cst_14 = arith.constant 1.000000e+00 : f32
    %30 = vector.broadcast %cst_14 : f32 to vector<8x32xf32>
    %31 = arith.subf %30, %25 : vector<8x32xf32>
    %32 = arith.mulf %31, %28 : vector<8x32xf32>
    %33 = arith.addf %29, %32 : vector<8x32xf32>
    %c0_15 = arith.constant 0 : index
    %c0_16 = arith.constant 0 : index
    %34 = vector.load %arg6[%c0_15, %c0_16] : memref<8x32xf32, #tpu.memory_space<vmem>>, vector<8x32xf32>
    tpu.vector_store %arg6[%c0_15, %c0_16], %33 {strides = array<i32>} : memref<8x32xf32, #tpu.memory_space<vmem>>, vector<8x32xf32>,
    %c0_17 = arith.constant 0 : index
    %c0_18 = arith.constant 0 : index
    %c0_19 = arith.constant 0 : index
    %35 = vector.load %arg5[%c0_17, %c0_18, %c0_19] : memref<1x8x32xf32, #tpu.memory_space<vmem>>, vector<1x8x32xf32>
    %36 = vector.shape_cast %35 : vector<1x8x32xf32> to vector<8x32xf32>
    %37 = vector.shape_cast %33 : vector<8x32xf32> to vector<1x8x32xf32>
    tpu.vector_store %arg5[%c0_17, %c0_18, %c0_19], %37 {strides = array<i32>} : memref<1x8x32xf32, #tpu.memory_space<vmem>>, vector<1x8x32xf32>,
    return
  }
  func.func @transform_0(%arg0: i32) -> (i32, i32, i32) {
    %c0_i32 = arith.constant 0 : i32
    %c0_i32_0 = arith.constant 0 : i32
    %c0_i32_1 = arith.constant 0 : i32
    return %arg0, %c0_i32, %c0_i32_0 : i32, i32, i32
  }
  func.func @transform_1(%arg0: i32) -> (i32, i32) {
    %c0_i32 = arith.constant 0 : i32
    %c0_i32_0 = arith.constant 0 : i32
    %c0_i32_1 = arith.constant 0 : i32
    return %c0_i32, %c0_i32_0 : i32, i32
  }
  func.func @transform_2(%arg0: i32) -> (i32, i32) {
    %c0_i32 = arith.constant 0 : i32
    %c0_i32_0 = arith.constant 0 : i32
    %c0_i32_1 = arith.constant 0 : i32
    return %c0_i32, %c0_i32_0 : i32, i32
  }
  func.func @transform_3(%arg0: i32) -> (i32, i32) {
    %c0_i32 = arith.constant 0 : i32
    %c0_i32_0 = arith.constant 0 : i32
    %c0_i32_1 = arith.constant 0 : i32
    return %c0_i32, %c0_i32_0 : i32, i32
  }
  func.func @transform_4(%arg0: i32) -> (i32, i32, i32) {
    %c0_i32 = arith.constant 0 : i32
    %c0_i32_0 = arith.constant 0 : i32
    %c0_i32_1 = arith.constant 0 : i32
    return %arg0, %c0_i32, %c0_i32_0 : i32, i32, i32
  }
}

</mosaic_0001>

<llo_original>
// kernel: tpu_custom_call.1
$region0: #{tpu_custom_call.1}
  #allocation0 [shape = 'u32[]', space=smem, size = 0x4, offset = 0x4, fixed_abs, tag = 'smem constant byte address 0x4 - core index']
  #allocation1 [shape = 'u32[144,128]{1,0:T(1,128)}', space=vmem, size = 0x12000, scoped, tag = 'internal scratch']
  #allocation2 [shape = 'f32[8,32]{1,0:T(8,128)}', space=vmem, size = 0x1000, scoped, tag = 'scratch operand']
  %s0 = inlined_call_operand.hbm [shape: f32[6,8,48], index: 0, kind: input, shape index: {}]
  %s1 = inlined_call_operand.hbm [shape: f32[8,32], index: 1, kind: input, shape index: {}]
  %s2 = inlined_call_operand.hbm [shape: f32[80,96], index: 2, kind: input, shape index: {}]
  %s3 = inlined_call_operand.hbm [shape: f32[32,32], index: 3, kind: input, shape index: {}]
  %s4 = inlined_call_operand.hbm [shape: f32[6,8,32], index: 4, kind: output, shape index: {}]
  %s5 = sld [smem:[#allocation0]]
  $region69: #{tpu_custom_call.1} parent=0
    _
  %s7 = ssub.s32 1, %s5
  %s8 = scalar_select 0, %s7, %s5
  $region1: #{tpu_custom_call.1} parent=0
    #allocation3 [shape = 'u8[8192]{0}', space=vmem, size = 0x2000, scoped, tag = 'input window, operand 0']
    #allocation4 [shape = 's32[2]{0}', space=sflag, size = 0x8, scoped, tag = 'scoped memory for tpu_custom_call.1']
    #allocation5 [shape = 's32[2]{0}', space=sflag, size = 0x8, scoped, tag = 'scoped memory for tpu_custom_call.1']
    #allocation6 [shape = 'u8[4096]{0}', space=vmem, size = 0x1000, scoped, tag = 'input window, operand 1, single buffered']
    #allocation7 [shape = 's32[1]{0}', space=sflag, size = 0x4, scoped, tag = 'scoped memory for tpu_custom_call.1']
    #allocation8 [shape = 'u8[40960]{0}', space=vmem, size = 0xa000, scoped, tag = 'input window, operand 2, single buffered']
    #allocation9 [shape = 'u8[16384]{0}', space=vmem, size = 0x4000, scoped, tag = 'input window, operand 3, single buffered']
    #allocation10 [shape = 's32[1]{0}', space=sflag, size = 0x4, scoped, tag = 'scoped memory for tpu_custom_call.1']
    #allocation11 [shape = 'u8[8192]{0}', space=vmem, size = 0x2000, scoped, tag = 'output window, operand 0']
    %9 = vsyncpa [#allocation4], 0
    %s10 = scalar_lea.sflag [#allocation4], 1
    %11 = vsyncpa %s10, 0
    %12 = vsyncpa [#allocation7], 0
    %13 = vsyncpa [#allocation10], 0
    %14 = vsyncpa [#allocation5], 0
    %s15 = scalar_lea.sflag [#allocation5], 1
    %16 = vsyncpa %s15, 0
    loop: start=0, step=1, limit=8
    $region2: #{tpu_custom_call.1} parent=1 // loop_pre_header
      _
    $region3: #{tpu_custom_call.1} parent=1 // loop_header
      %s18 = sphi 0, %s22
      %p19 = scmp.ge.s32.totalorder %s18, 8
      %s28 = sphi 0, %s30
      %s31 = sphi 0, %s28
      %s32 = sphi 0, %s31
      %s48 = sphi 0, %s32
      %s52 = sphi 0, %s52
      %s54 = sphi 0, %s52
      %s55 = sphi 0, %s54
      %s69 = sphi 0, %s55
      %s73 = sphi 0, %s73
      %s75 = sphi 0, %s73
      %s76 = sphi 0, %s75
      %s90 = sphi 0, %s76
      %s94 = sphi 0, %s94
      %s96 = sphi 0, %s94
      %s97 = sphi 0, %s96
      %s111 = sphi 0, %s97
      %s117 = sphi 0, %s119
      %s120 = sphi 0, %s117
      %s121 = sphi 0, %s120
      %s137 = sphi 0, %s121
    $region4: #{tpu_custom_call.1} parent=1 // loop_header_branch
      %21 = sbr.rel (%p19) target = $region8
    $region5: #{tpu_custom_call.1} parent=1 // loop_body
      %s23 = ssub.s32 %s18, 1
      %s24 = ssub.s32 %s18, 2
      %s25 = sadd.s32 %s18, 1
      %s26 = ssub.s32 %s18, %s25
      %p27 = scmp.eq.s32.totalorder %s26, 0
      %s29 = sadd.s32 %s28, 1
      %s30 = scalar_select %p27, %s28, %s29
      %p33 = pneg %p27
      %p34 = scmp.eq.s32.totalorder %s18, 5
      %p35 = por %p33, %p34
      %p36 = scmp.ne.s32.totalorder %s28, %s31
      %p37 = scmp.eq.s32.totalorder %s18, 0
      %p38 = por %p36, %p37
      %p39 = scmp.ne.s32.totalorder %s28, %s31
      %p40 = scmp.eq.s32.totalorder %s23, 5
      %p41 = por %p39, %p40
      %p42 = scmp.ne.s32.totalorder %s31, %s32
      %p43 = scmp.eq.s32.totalorder %s23, 0
      %p44 = por %p42, %p43
      %p45 = scmp.ne.s32.totalorder %s31, %s32
      %p46 = scmp.eq.s32.totalorder %s24, 5
      %p47 = por %p45, %p46
      %p49 = scmp.ne.s32.totalorder %s32, %s48
      %p50 = scmp.eq.s32.totalorder %s24, 0
      %p51 = por %p49, %p50
      %s53 = sadd.s32 %s52, 1
      %p56 = scmp.eq.s32.totalorder %s18, 5
      %p57 = scmp.ne.s32.totalorder %s52, %s54
      %p58 = scmp.eq.s32.totalorder %s18, 0
      %p59 = por %p57, %p58
      %p60 = scmp.ne.s32.totalorder %s52, %s54
      %p61 = scmp.eq.s32.totalorder %s23, 5
      %p62 = por %p60, %p61
      %p63 = scmp.ne.s32.totalorder %s54, %s55
      %p64 = scmp.eq.s32.totalorder %s23, 0
      %p65 = por %p63, %p64
      %p66 = scmp.ne.s32.totalorder %s54, %s55
      %p67 = scmp.eq.s32.totalorder %s24, 5
      %p68 = por %p66, %p67
      %p70 = scmp.ne.s32.totalorder %s55, %s69
      %p71 = scmp.eq.s32.totalorder %s24, 0
      %p72 = por %p70, %p71
      %s74 = sadd.s32 %s73, 1
      %p77 = scmp.eq.s32.totalorder %s18, 5
      %p78 = scmp.ne.s32.totalorder %s73, %s75
      %p79 = scmp.eq.s32.totalorder %s18, 0
      %p80 = por %p78, %p79
      %p81 = scmp.ne.s32.totalorder %s73, %s75
      %p82 = scmp.eq.s32.totalorder %s23, 5
      %p83 = por %p81, %p82
      %p84 = scmp.ne.s32.totalorder %s75, %s76
      %p85 = scmp.eq.s32.totalorder %s23, 0
      %p86 = por %p84, %p85
      %p87 = scmp.ne.s32.totalorder %s75, %s76
      %p88 = scmp.eq.s32.totalorder %s24, 5
      %p89 = por %p87, %p88
      %p91 = scmp.ne.s32.totalorder %s76, %s90
      %p92 = scmp.eq.s32.totalorder %s24, 0
      %p93 = por %p91, %p92
      %s95 = sadd.s32 %s94, 1
      %p98 = scmp.eq.s32.totalorder %s18, 5
      %p99 = scmp.ne.s32.totalorder %s94, %s96
      %p100 = scmp.eq.s32.totalorder %s18, 0
      %p101 = por %p99, %p100
      %p102 = scmp.ne.s32.totalorder %s94, %s96
      %p103 = scmp.eq.s32.totalorder %s23, 5
      %p104 = por %p102, %p103
      %p105 = scmp.ne.s32.totalorder %s96, %s97
      %p106 = scmp.eq.s32.totalorder %s23, 0
      %p107 = por %p105, %p106
      %p108 = scmp.ne.s32.totalorder %s96, %s97
      %p109 = scmp.eq.s32.totalorder %s24, 5
      %p110 = por %p108, %p109
      %p112 = scmp.ne.s32.totalorder %s97, %s111
      %p113 = scmp.eq.s32.totalorder %s24, 0
      %p114 = por %p112, %p113
      %s115 = ssub.s32 %s18, %s25
      %p116 = scmp.eq.s32.totalorder %s115, 0
      %s118 = sadd.s32 %s117, 1
      %s119 = scalar_select %p116, %s117, %s118
      %p122 = pneg %p116
      %p123 = scmp.eq.s32.totalorder %s18, 5
      %p124 = por %p122, %p123
      %p125 = scmp.ne.s32.totalorder %s117, %s120
      %p126 = scmp.eq.s32.totalorder %s18, 0
      %p127 = por %p125, %p126
      %p128 = scmp.ne.s32.totalorder %s117, %s120
      %p129 = scmp.eq.s32.totalorder %s23, 5
      %p130 = por %p128, %p129
      %p131 = scmp.ne.s32.totalorder %s120, %s121
      %p132 = scmp.eq.s32.totalorder %s23, 0
      %p133 = por %p131, %p132
      %p134 = scmp.ne.s32.totalorder %s120, %s121
      %p135 = scmp.eq.s32.totalorder %s24, 5
      %p136 = por %p134, %p135
      %p138 = scmp.ne.s32.totalorder %s121, %s137
      %p139 = scmp.eq.s32.totalorder %s24, 0
      %p140 = por %p138, %p139
      %p141 = scmp.le.s32.totalorder 1, %s18
      %p142 = scmp.lt.s32.totalorder %s18, 7
      %p143 = pnand %p141, %p142
      %p144 = pneg %p143
      // Predicated region
      $region9: #{tpu_custom_call.1} parent=5 // pred_check
        _
      $region10: #{tpu_custom_call.1} parent=5 // pred_check_branch
        %146 = sbr.rel (%p143) target = $region12
      $region11: #{tpu_custom_call.1} parent=5 // pred_region
        %s147 = ssub.s32 %s18, 1
        // Predicated region
        $region13: #{tpu_custom_call.1} parent=11 // pred_check
          %p148 = pneg %p65
        $region14: #{tpu_custom_call.1} parent=11 // pred_check_branch
          %150 = sbr.rel (%p148) target = $region16
        $region15: #{tpu_custom_call.1} parent=11 // pred_region
          %s152 = ssub.s32 128, 128
          %153 = vsyncadd [#allocation7], %s152
          %s155 = sshll.u32 [#allocation6], 4
          %s156 = int_to_ptr.vmem [resolvable:$true] %s155
          %158 = dma.hbm_to_vmem [thread:$0]  %s1, 128, %s156, [#allocation7]
        $region16: #{tpu_custom_call.1} parent=11 // pred_fallthru
          _
        // Predicated region
        $region17: #{tpu_custom_call.1} parent=11 // pred_check
          %p159 = pneg %p86
        $region18: #{tpu_custom_call.1} parent=11 // pred_check_branch
          %161 = sbr.rel (%p159) target = $region20
        $region19: #{tpu_custom_call.1} parent=11 // pred_region
          %s163 = ssub.s32 1280, 1280
          %164 = vsyncadd [#allocation7], %s163
          %s165 = sshll.u32 [#allocation8], 4
          %s166 = int_to_ptr.vmem [resolvable:$true] %s165
          %171 = dma.hbm_to_vmem [thread:$0]  %s2, 1280, %s166, [#allocation7], 128, 128, 8
        $region20: #{tpu_custom_call.1} parent=11 // pred_fallthru
          _
        // Predicated region
        $region21: #{tpu_custom_call.1} parent=11 // pred_check
          %p172 = pneg %p107
        $region22: #{tpu_custom_call.1} parent=11 // pred_check_branch
          %174 = sbr.rel (%p172) target = $region24
        $region23: #{tpu_custom_call.1} parent=11 // pred_region
          %s176 = ssub.s32 512, 512
          %177 = vsyncadd [#allocation10], %s176
          %s178 = sshll.u32 [#allocation9], 4
          %s179 = int_to_ptr.vmem [resolvable:$true] %s178
          %184 = dma.hbm_to_vmem [thread:$0]  %s3, 512, %s179, [#allocation10], 128, 128, 8
        $region24: #{tpu_custom_call.1} parent=11 // pred_fallthru
          _
      $region12: #{tpu_custom_call.1} parent=5 // pred_fallthru
        _
      %p185 = scmp.lt.s32.totalorder %s18, 6
      // Predicated region
      $region25: #{tpu_custom_call.1} parent=5 // pred_check
        %p186 = pneg %p185
      $region26: #{tpu_custom_call.1} parent=5 // pred_check_branch
        %188 = sbr.rel (%p186) target = $region28
      $region27: #{tpu_custom_call.1} parent=5 // pred_region
        // Predicated region
        $region29: #{tpu_custom_call.1} parent=27 // pred_check
          %p189 = pneg %p38
        $region30: #{tpu_custom_call.1} parent=27 // pred_check_branch
          %191 = sbr.rel (%p189) target = $region32
        $region31: #{tpu_custom_call.1} parent=27 // pred_region
          %s192 = sand.u32 %s28, 1
          %s193 = scalar_lea.sflag [#allocation4], %s192
          %s194 = sand.u32 %s28, 1
          %s195 = smul.addr %s194, 8
          %s196 = scalar_lea.vmem [#allocation3], %s195
          %s198 = ssub.s32 128, 128
          %199 = vsyncadd %s193, %s198
          %s200 = smul.addr %s18, 128
          %s201 = scalar_lea.hbm %s0, %s200
          %s203 = sshll.u32 %s196, 4
          %s204 = int_to_ptr.vmem [resolvable:$true] %s203
          %206 = dma.hbm_to_vmem [thread:$0]  %s201, 128, %s204, %s193
        $region32: #{tpu_custom_call.1} parent=27 // pred_fallthru
          _
      $region28: #{tpu_custom_call.1} parent=5 // pred_fallthru
        _
      %p207 = scmp.le.s32.totalorder 1, %s18
      %p208 = scmp.lt.s32.totalorder %s18, 7
      %p209 = pnand %p207, %p208
      %p210 = pneg %p209
      // Predicated region
      $region33: #{tpu_custom_call.1} parent=5 // pred_check
        _
      $region34: #{tpu_custom_call.1} parent=5 // pred_check_branch
        %212 = sbr.rel (%p209) target = $region36
      $region35: #{tpu_custom_call.1} parent=5 // pred_region
        %s213 = ssub.s32 %s18, 1
        %s214 = sand.u32 %s31, 1
        %s215 = scalar_lea.sflag [#allocation4], %s214
        %s216 = sand.u32 %s31, 1
        %s217 = smul.addr %s216, 8
        %s218 = scalar_lea.vmem [#allocation3], %s217
        // Predicated region
        $region37: #{tpu_custom_call.1} parent=35 // pred_check
          %p219 = pneg %p44
        $region38: #{tpu_custom_call.1} parent=35 // pred_check_branch
          %221 = sbr.rel (%p219) target = $region40
        $region39: #{tpu_custom_call.1} parent=35 // pred_region
          %222 = dma.done %s215, 128
        $region40: #{tpu_custom_call.1} parent=35 // pred_fallthru
          _
        // Predicated region
        $region41: #{tpu_custom_call.1} parent=35 // pred_check
          %p223 = pneg %p65
        $region42: #{tpu_custom_call.1} parent=35 // pred_check_branch
          %225 = sbr.rel (%p223) target = $region44
        $region43: #{tpu_custom_call.1} parent=35 // pred_region
          %226 = dma.done [#allocation7], 128
        $region44: #{tpu_custom_call.1} parent=35 // pred_fallthru
          _
        // Predicated region
        $region45: #{tpu_custom_call.1} parent=35 // pred_check
          %p227 = pneg %p86
        $region46: #{tpu_custom_call.1} parent=35 // pred_check_branch
          %229 = sbr.rel (%p227) target = $region48
        $region47: #{tpu_custom_call.1} parent=35 // pred_region
          %230 = dma.done [#allocation7], 1280
        $region48: #{tpu_custom_call.1} parent=35 // pred_fallthru
          _
        // Predicated region
        $region49: #{tpu_custom_call.1} parent=35 // pred_check
          %p231 = pneg %p107
        $region50: #{tpu_custom_call.1} parent=35 // pred_check_branch
          %233 = sbr.rel (%p231) target = $region52
        $region51: #{tpu_custom_call.1} parent=35 // pred_region
          %234 = dma.done [#allocation10], 512
        $region52: #{tpu_custom_call.1} parent=35 // pred_fallthru
          _
        %s235 = sand.u32 %s31, 1
        %s236 = scalar_lea.sflag [#allocation4], %s235
        %s237 = sand.u32 %s31, 1
        %s238 = smul.addr %s237, 8
        %s239 = scalar_lea.vmem [#allocation3], %s238
        %p240 = pneg %p44
        %p241 = pneg %p41
        %p242 = pneg %p65
        %p243 = pneg %p62
        %p244 = pneg %p86
        %p245 = pneg %p83
        %p246 = pneg %p107
        %p247 = pneg %p104
        %p248 = pneg %p133
        %p249 = pneg %p130
        %s250 = sand.u32 %s120, 1
        %s251 = scalar_lea.sflag [#allocation5], %s250
        %s252 = sand.u32 %s120, 1
        %s253 = smul.addr %s252, 8
        %s254 = scalar_lea.vmem [#allocation11], %s253
        %p255 = scmp.eq.s32.totalorder %s23, 0
        // Predicated region
        $region53: #{tpu_custom_call.1} parent=35 // pred_check
          %p256 = pneg %p255
        $region54: #{tpu_custom_call.1} parent=35 // pred_check_branch
          %258 = sbr.rel (%p256) target = $region56
        $region55: #{tpu_custom_call.1} parent=35 // pred_region
          %v259 = vld [vmem:[#allocation6] sm:$0xff]
          %vm260 = vcmask 261120
          %261 = vst.msk [vmem:[#allocation2] sm:$0xff] %vm260, %v259
        $region56: #{tpu_custom_call.1} parent=35 // pred_fallthru
          _
        %v262 = vld [vmem:[%s218] sm:$0xff]
        %v263 = vld [vmem:[#allocation2] sm:$0xff]
        %v264 = vld [vmem:[#allocation8] sm:$0xff]
        %v265 = vld [vmem:[#allocation8 + $0x8] sm:$0xff]
        %v266 = vld [vmem:[#allocation8 + $0x10] sm:$0xff]
        %v267 = vld [vmem:[#allocation8 + $0x18] sm:$0xff]
        %v268 = vld [vmem:[#allocation8 + $0x20] sm:$0xff]
        %v269 = vld [vmem:[#allocation8 + $0x28] sm:$0xff]
        %v270 = vld [vmem:[#allocation8 + $0x30] sm:$0xff]
        %v271 = vld [vmem:[#allocation8 + $0x38] sm:$0xff]
        %v272 = vld [vmem:[#allocation8 + $0x40] sm:$0xff]
        %v273 = vld [vmem:[#allocation8 + $0x48] sm:$0xff]
        %vm274 = vcmask 261120
        %v276 = vsel %vm274, %v263, 0
        %278 = vmatprep.subr.mxu0 0.0
        %279 = vmatpush1.msra.mxu0 0.0
        %280 = vmatprep.subr.mxu0 0.0
        %281 = vmatpush1.msra.mxu0 0.0
        %282 = vmatprep.subr.mxu0 0.0
        %283 = vmatpush1.msra.mxu0 0.0
        %284 = vmatprep.subr.mxu0 0.0
        %285 = vmatpush1.msra.mxu0 0.0
        %286 = vmatprep.subr.mxu0 0.0
        %287 = vmatpush1.msra.mxu0 0.0
        %288 = vmatprep.subr.mxu0 0.0
        %289 = vmatpush1.msra.mxu0 0.0
        %290 = vmatprep.subr.mxu0 0.0
        %291 = vmatpush1.msra.mxu0 0.0
        %292 = vmatprep.subr.mxu0 0.0
        %293 = vmatpush1.msra.mxu0 0.0
        %294 = vmatprep.subr.mxu0 0.0
        %295 = vmatpush1.msra.mxu0 0.0
        %296 = vmatprep.subr.mxu0 0.0
        %297 = vmatpush1.msra.mxu0 0.0
        %298 = vmatprep.subr.mxu0 0.0
        %299 = vmatpush1.msra.mxu0 0.0
        %300 = vmatprep.subr.mxu0 0.0
        %301 = vmatpush1.msra.mxu0 0.0
        %302 = vmatprep.subr.mxu0 0.0
        %303 = vmatpush1.msra.mxu0 %v273
        %304 = vmatprep.subr.mxu0 0.0
        %305 = vmatpush1.msra.mxu0 %v272
        %306 = vmatprep.subr.mxu0 0.0
        %307 = vmatpush1.msra.mxu0 %v271
        %308 = vmatprep.subr.mxu0 0.0
        %309 = vmatpush1.msra.mxu0 %v270
        %310 = vmatprep.subr.mxu0 0.0
        %311 = vmatpush2.msra.mxu0 0.0
        %312 = vmatprep.subr.mxu0 0.0
        %313 = vmatpush2.msra.mxu0 0.0
        %314 = vmatprep.subr.mxu0 0.0
        %315 = vmatpush2.msra.mxu0 0.0
        %316 = vmatprep.subr.mxu0 0.0
        %317 = vmatpush2.msra.mxu0 0.0
        %318 = vmatprep.subr.mxu0 0.0
        %319 = vmatpush2.msra.mxu0 0.0
        %320 = vmatprep.subr.mxu0 0.0
        %321 = vmatpush2.msra.mxu0 0.0
        %322 = vmatprep.subr.mxu0 0.0
        %323 = vmatpush2.msra.mxu0 0.0
        %324 = vmatprep.subr.mxu0 0.0
        %325 = vmatpush2.msra.mxu0 0.0
        %326 = vmatprep.subr.mxu0 0.0
        %327 = vmatpush2.msra.mxu0 0.0
        %328 = vmatprep.subr.mxu0 0.0
        %329 = vmatpush2.msra.mxu0 0.0
        %330 = vmatprep.subr.mxu0 0.0
        %331 = vmatpush2.msra.mxu0 0.0
        %332 = vmatprep.subr.mxu0 0.0
        %333 = vmatpush2.msra.mxu0 0.0
        %334 = vmatprep.subr.mxu0 0.0
        %335 = vmatpush2.msra.mxu0 0.0
        %336 = vmatprep.subr.mxu0 0.0
        %337 = vmatpush2.msra.mxu0 0.0
        %338 = vmatprep.subr.mxu0 0.0
        %339 = vmatpush2.msra.mxu0 0.0
        %340 = vmatprep.subr.mxu0 0.0
        %341 = vmatpush2.msra.mxu0 0.0
        %342 = vmatprep.mubr.f32.mxu0 0.0
        %343 = vmatmul.mubr.f32.gmra.mxu0 %v276
        %v344 = vpop.f32.mrf.mxu0
        %v345 = vadd.f32 0.0, %v344
        %v346 = vpop.f32.mrf.mxu0
        %347 = vdwg.mxu0
        %vm348 = vcmask 392192
        %v350 = vsel %vm348, %v262, 0
        %352 = vmatprep.subr.mxu0 0.0
        %353 = vmatpush1.msra.mxu0 0.0
        %354 = vmatprep.subr.mxu0 0.0
        %355 = vmatpush1.msra.mxu0 0.0
        %356 = vmatprep.subr.mxu0 0.0
        %357 = vmatpush1.msra.mxu0 0.0
        %358 = vmatprep.subr.mxu0 0.0
        %359 = vmatpush1.msra.mxu0 0.0
        %360 = vmatprep.subr.mxu0 0.0
        %361 = vmatpush1.msra.mxu0 0.0
        %362 = vmatprep.subr.mxu0 0.0
        %363 = vmatpush1.msra.mxu0 0.0
        %364 = vmatprep.subr.mxu0 0.0
        %365 = vmatpush1.msra.mxu0 0.0
        %366 = vmatprep.subr.mxu0 0.0
        %367 = vmatpush1.msra.mxu0 0.0
        %368 = vmatprep.subr.mxu0 0.0
        %369 = vmatpush1.msra.mxu0 0.0
        %370 = vmatprep.subr.mxu0 0.0
        %371 = vmatpush1.msra.mxu0 0.0
        %372 = vmatprep.subr.mxu0 0.0
        %373 = vmatpush1.msra.mxu0 %v269
        %374 = vmatprep.subr.mxu0 0.0
        %375 = vmatpush1.msra.mxu0 %v268
        %376 = vmatprep.subr.mxu0 0.0
        %377 = vmatpush1.msra.mxu0 %v267
        %378 = vmatprep.subr.mxu0 0.0
        %379 = vmatpush1.msra.mxu0 %v266
        %380 = vmatprep.subr.mxu0 0.0
        %381 = vmatpush1.msra.mxu0 %v265
        %382 = vmatprep.subr.mxu0 0.0
        %383 = vmatpush1.msra.mxu0 %v264
        %384 = vmatprep.subr.mxu0 0.0
        %385 = vmatpush2.msra.mxu0 0.0
        %386 = vmatprep.subr.mxu0 0.0
        %387 = vmatpush2.msra.mxu0 0.0
        %388 = vmatprep.subr.mxu0 0.0
        %389 = vmatpush2.msra.mxu0 0.0
        %390 = vmatprep.subr.mxu0 0.0
        %391 = vmatpush2.msra.mxu0 0.0
        %392 = vmatprep.subr.mxu0 0.0
        %393 = vmatpush2.msra.mxu0 0.0
        %394 = vmatprep.subr.mxu0 0.0
        %395 = vmatpush2.msra.mxu0 0.0
        %396 = vmatprep.subr.mxu0 0.0
        %397 = vmatpush2.msra.mxu0 0.0
        %398 = vmatprep.subr.mxu0 0.0
        %399 = vmatpush2.msra.mxu0 0.0
        %400 = vmatprep.subr.mxu0 0.0
        %401 = vmatpush2.msra.mxu0 0.0
        %402 = vmatprep.subr.mxu0 0.0
        %403 = vmatpush2.msra.mxu0 0.0
        %404 = vmatprep.subr.mxu0 0.0
        %405 = vmatpush2.msra.mxu0 0.0
        %406 = vmatprep.subr.mxu0 0.0
        %407 = vmatpush2.msra.mxu0 0.0
        %408 = vmatprep.subr.mxu0 0.0
        %409 = vmatpush2.msra.mxu0 0.0
        %410 = vmatprep.subr.mxu0 0.0
        %411 = vmatpush2.msra.mxu0 0.0
        %412 = vmatprep.subr.mxu0 0.0
        %413 = vmatpush2.msra.mxu0 0.0
        %414 = vmatprep.subr.mxu0 0.0
        %415 = vmatpush2.msra.mxu0 0.0
        %416 = vmatprep.mubr.f32.mxu0 0.0
        %417 = vmatmul.mubr.f32.gmra.mxu0 %v350
        %v418 = vpop.f32.mrf.mxu0
        %v419 = vadd.f32 %v345, %v418
        %v420 = vpop.f32.mrf.mxu0
        %421 = vdwg.mxu0
        %v422 = vxor.u32 %v419, 2147483648
        %v423 = vmul.f32 %v422, 1.442695
        %v424 = vpow.pop %v423
        %v425 = vadd.f32 %v424, 1.0
        %v426 = vrcp.pop %v425
        %v427 = vmul.f32 1.0, %v426
        %v428 = vmul.f32 %v427, %v263
        %v429 = vld [vmem:[#allocation9] sm:$0xff]
        %v430 = vld [vmem:[#allocation9 + $0x8] sm:$0xff]
        %v431 = vld [vmem:[#allocation9 + $0x10] sm:$0xff]
        %v432 = vld [vmem:[#allocation9 + $0x18] sm:$0xff]
        %v434 = vsel %vm274, %v428, 0
        %436 = vmatprep.subr.mxu0 0.0
        %437 = vmatpush1.msra.mxu0 0.0
        %438 = vmatprep.subr.mxu0 0.0
        %439 = vmatpush1.msra.mxu0 0.0
        %440 = vmatprep.subr.mxu0 0.0
        %441 = vmatpush1.msra.mxu0 0.0
        %442 = vmatprep.subr.mxu0 0.0
        %443 = vmatpush1.msra.mxu0 0.0
        %444 = vmatprep.subr.mxu0 0.0
        %445 = vmatpush1.msra.mxu0 0.0
        %446 = vmatprep.subr.mxu0 0.0
        %447 = vmatpush1.msra.mxu0 0.0
        %448 = vmatprep.subr.mxu0 0.0
        %449 = vmatpush1.msra.mxu0 0.0
        %450 = vmatprep.subr.mxu0 0.0
        %451 = vmatpush1.msra.mxu0 0.0
        %452 = vmatprep.subr.mxu0 0.0
        %453 = vmatpush1.msra.mxu0 0.0
        %454 = vmatprep.subr.mxu0 0.0
        %455 = vmatpush1.msra.mxu0 0.0
        %456 = vmatprep.subr.mxu0 0.0
        %457 = vmatpush1.msra.mxu0 0.0
        %458 = vmatprep.subr.mxu0 0.0
        %459 = vmatpush1.msra.mxu0 0.0
        %460 = vmatprep.subr.mxu0 0.0
        %461 = vmatpush1.msra.mxu0 %v432
        %462 = vmatprep.subr.mxu0 0.0
        %463 = vmatpush1.msra.mxu0 %v431
        %464 = vmatprep.subr.mxu0 0.0
        %465 = vmatpush1.msra.mxu0 %v430
        %466 = vmatprep.subr.mxu0 0.0
        %467 = vmatpush1.msra.mxu0 %v429
        %468 = vmatprep.subr.mxu0 0.0
        %469 = vmatpush2.msra.mxu0 0.0
        %470 = vmatprep.subr.mxu0 0.0
        %471 = vmatpush2.msra.mxu0 0.0
        %472 = vmatprep.subr.mxu0 0.0
        %473 = vmatpush2.msra.mxu0 0.0
        %474 = vmatprep.subr.mxu0 0.0
        %475 = vmatpush2.msra.mxu0 0.0
        %476 = vmatprep.subr.mxu0 0.0
        %477 = vmatpush2.msra.mxu0 0.0
        %478 = vmatprep.subr.mxu0 0.0
        %479 = vmatpush2.msra.mxu0 0.0
        %480 = vmatprep.subr.mxu0 0.0
        %481 = vmatpush2.msra.mxu0 0.0
        %482 = vmatprep.subr.mxu0 0.0
        %483 = vmatpush2.msra.mxu0 0.0
        %484 = vmatprep.subr.mxu0 0.0
        %485 = vmatpush2.msra.mxu0 0.0
        %486 = vmatprep.subr.mxu0 0.0
        %487 = vmatpush2.msra.mxu0 0.0
        %488 = vmatprep.subr.mxu0 0.0
        %489 = vmatpush2.msra.mxu0 0.0
        %490 = vmatprep.subr.mxu0 0.0
        %491 = vmatpush2.msra.mxu0 0.0
        %492 = vmatprep.subr.mxu0 0.0
        %493 = vmatpush2.msra.mxu0 0.0
        %494 = vmatprep.subr.mxu0 0.0
        %495 = vmatpush2.msra.mxu0 0.0
        %496 = vmatprep.subr.mxu0 0.0
        %497 = vmatpush2.msra.mxu0 0.0
        %498 = vmatprep.subr.mxu0 0.0
        %499 = vmatpush2.msra.mxu0 0.0
        %500 = vmatprep.mubr.f32.mxu0 0.0
        %501 = vmatmul.mubr.f32.gmra.mxu0 %v434
        %v502 = vpop.f32.mrf.mxu0
        %v503 = vadd.f32 0.0, %v502
        %v504 = vpop.f32.mrf.mxu0
        %505 = vdwg.mxu0
        %507 = vrot.lane.b32.xlu0 %v503, 64
        %v508 = vpop.permute.xlu0 %507
        %v510 = vadd.f32 %v419, %v508
        %v511 = vtanh.pop %v510
        %512 = vrot.lane.b32.xlu0 %v263, 32
        %v513 = vpop.permute.xlu0 %512
        %v515 = vmul.f32 %v427, %v513
        %v516 = vsub.f32 1.0, %v427
        %518 = vrot.lane.b32.xlu0 %v511, 96
        %v519 = vpop.permute.xlu0 %518
        %v521 = vmul.f32 %v516, %v519
        %v522 = vadd.f32 %v515, %v521
        %524 = vrot.lane.b32.xlu0 %v522, 96
        %v525 = vpop.permute.xlu0 %524
        %527 = vst.msk [vmem:[#allocation2] sm:$0xff] %vm274, %v525
        %528 = vst.msk [vmem:[%s254] sm:$0xff] %vm274, %v525
        %s529 = sand.u32 %s120, 1
        %s530 = scalar_lea.sflag [#allocation5], %s529
        %s531 = sand.u32 %s120, 1
        %s532 = smul.addr %s531, 8
        %s533 = scalar_lea.vmem [#allocation11], %s532
        // Predicated region
        $region57: #{tpu_custom_call.1} parent=35 // pred_check
          %p534 = pneg %p130
        $region58: #{tpu_custom_call.1} parent=35 // pred_check_branch
          %536 = sbr.rel (%p534) target = $region60
        $region59: #{tpu_custom_call.1} parent=35 // pred_region
          %s538 = ssub.s32 128, 128
          %539 = vsyncadd %s530, %s538
          %s540 = smul.addr %s23, 128
          %s541 = scalar_lea.hbm %s4, %s540
          %s543 = sshll.u32 %s533, 4
          %s544 = int_to_ptr.vmem [resolvable:$true] %s543
          %546 = dma.vmem_to_hbm [thread:$0]  %s544, 128, %s541, %s530
        $region60: #{tpu_custom_call.1} parent=35 // pred_fallthru
          _
      $region36: #{tpu_custom_call.1} parent=5 // pred_fallthru
        _
      %p547 = scmp.le.s32.totalorder 2, %s18
      // Predicated region
      $region61: #{tpu_custom_call.1} parent=5 // pred_check
        %p548 = pneg %p547
      $region62: #{tpu_custom_call.1} parent=5 // pred_check_branch
        %550 = sbr.rel (%p548) target = $region64
      $region63: #{tpu_custom_call.1} parent=5 // pred_region
        %s551 = ssub.s32 %s18, 2
        // Predicated region
        $region65: #{tpu_custom_call.1} parent=63 // pred_check
          %p552 = pneg %p136
        $region66: #{tpu_custom_call.1} parent=63 // pred_check_branch
          %554 = sbr.rel (%p552) target = $region68
        $region67: #{tpu_custom_call.1} parent=63 // pred_region
          %s555 = sand.u32 %s121, 1
          %s556 = scalar_lea.sflag [#allocation5], %s555
          %s557 = sand.u32 %s121, 1
          %s558 = smul.addr %s557, 8
          %s559 = scalar_lea.vmem [#allocation11], %s558
          %560 = dma.done %s556, 128
        $region68: #{tpu_custom_call.1} parent=63 // pred_fallthru
          _
      $region64: #{tpu_custom_call.1} parent=5 // pred_fallthru
        _
    $region6: #{tpu_custom_call.1} parent=1 // loop_footer
      %s22 = sadd.s32 1, %s18
    $region7: #{tpu_custom_call.1} parent=1 // loop_footer_branch
      %17 = sbr.rel target = $region3
    $region8: #{tpu_custom_call.1} parent=1 // loop_exit
      _
    %561 = vsyncpa [#allocation4], 1
    %s562 = scalar_lea.sflag [#allocation4], 1
    %563 = vsyncpa %s562, 1
    %564 = vsyncpa [#allocation7], 1
    %565 = vsyncpa [#allocation10], 1
    %566 = vsyncpa [#allocation5], 1
    %s567 = scalar_lea.sflag [#allocation5], 1
    %568 = vsyncpa %s567, 1

</llo_original>
